<compile_context>
chip_gen: v7x
topology: tpu7x:2x2x1
jax: 0.10.0
libtpu: 0.0.40
codegen_flags: <defaults>
</compile_context>

<pallas_src>
import functools
import math

import jax
import jax.numpy as jnp
from jax.experimental import pallas as pl
from jax.experimental.pallas import tpu as pltpu


def _round_up(n, m):
    return ((n + m - 1) // m) * m


def _agentzeka_kernel(
    x_ref,        # [bm, in_p]                      bf16
    w_x_ref,      # [in_p, out_p + in_p]            bf16  (0.5*W_lin | W_pre)
    w_trn_ref,    # [in_p, out_p]                   bf16
    w_hyp_ref,    # [out_p, out_p]                  bf16
    w_ada_ref,    # [out_p, out_p]                  bf16  (0.5*W_ada)
    b_all_ref,    # [1, (out_p+in_p) + 3*out_p]     f32   (all biases, concat)
    o_ref,        # [bm, out_p]
    *, in_p, out_p,
):
    x = x_ref[...]  # bf16
    o0 = out_p + in_p  # static, multiple of 128 -> all slices lane-aligned

    # One wide MXU pass over x covers both the (0.5-scaled) traditional Linear
    # and the agent preprocessor. f32 accumulation.
    y = (jnp.dot(x, w_x_ref[...], preferred_element_type=jnp.float32)
         + b_all_ref[:, :o0])
    trad_half = y[:, :out_p]              # 0.5 * (x @ W_lin + b_lin)
    h = jnp.maximum(y[:, out_p:], 0.0)    # preprocessor + ReLU

    h = (jnp.dot(h.astype(w_trn_ref.dtype), w_trn_ref[...],
                 preferred_element_type=jnp.float32)
         + b_all_ref[:, o0:o0 + out_p])
    h = jnp.maximum(h, 0.0)               # trainer + ReLU

    h = (jnp.dot(h.astype(w_hyp_ref.dtype), w_hyp_ref[...],
                 preferred_element_type=jnp.float32)
         + b_all_ref[:, o0 + out_p:o0 + 2 * out_p])
    h = jnp.maximum(h, 0.0)               # hypertuner + ReLU

    agent_half = (jnp.dot(h.astype(w_ada_ref.dtype), w_ada_ref[...],
                          preferred_element_type=jnp.float32)
                  + b_all_ref[:, o0 + 2 * out_p:o0 + 3 * out_p])
    # adaptive (0.5 already folded into w_ada/b_ada)

    o_ref[...] = (trad_half + agent_half).astype(o_ref.dtype)


def pack_params(params, *, compute_dtype=jnp.bfloat16):
    """Pad all feature dims to multiples of 128, fuse the two x-consuming
    matmuls, concat all biases into one row, fold the 0.5 averaging into the
    weights, cast matmul operands to bf16. Done once, outside the per-call
    path. Note: matmul operands (and the 0.5-folded weights) are bf16 with f32
    accumulation; this is the numerics contract of the kernel."""
    in_f, out_f = params["w_lin"].shape
    in_p = _round_up(in_f, 128)
    out_p = _round_up(out_f, 128)

    def pad_w(w, rp, cp):
        r, c = w.shape
        return jnp.pad(w, ((0, rp - r), (0, cp - c)))

    def pad_b(b, cp):
        return jnp.pad(b, ((0, 0), (0, cp - b.shape[1])))

    w_lin = pad_w(params["w_lin"] * 0.5, in_p, out_p)      # 0.5 folded in
    b_lin = pad_b(params["b_lin"] * 0.5, out_p)
    w_pre = pad_w(params["w_pre"], in_p, in_p)
    b_pre = pad_b(params["b_pre"], in_p)
    w_trn = pad_w(params["w_trn"], in_p, out_p)
    b_trn = pad_b(params["b_trn"], out_p)
    w_hyp = pad_w(params["w_hyp"], out_p, out_p)
    b_hyp = pad_b(params["b_hyp"], out_p)
    w_ada = pad_w(params["w_ada"] * 0.5, out_p, out_p)      # 0.5 folded in
    b_ada = pad_b(params["b_ada"] * 0.5, out_p)

    # Single f32 bias row; all offsets are multiples of 128 -> static,
    # lane-aligned slices inside the kernel.
    b_all = jnp.concatenate([b_lin, b_pre, b_trn, b_hyp, b_ada],
                            axis=1).astype(jnp.float32)

    return dict(
        w_x=jnp.concatenate([w_lin, w_pre], axis=1).astype(compute_dtype),
        w_trn=w_trn.astype(compute_dtype),
        w_hyp=w_hyp.astype(compute_dtype),
        w_ada=w_ada.astype(compute_dtype),
        b_all=b_all,
        in_features=in_f, out_features=out_f, in_p=in_p, out_p=out_p,
        compute_dtype=compute_dtype,
    )


def _vmem_limit_bytes():
    """Generation-aware scoped-VMEM limit (~3/4 of physical per-core VMEM):
    ~48 MiB on v7x (64 MiB physical), ~96 MiB on v5e/v6e (128 MiB)."""
    cap = None
    try:
        cap = getattr(pltpu.get_tpu_info(), "vmem_capacity_bytes", None)
    except Exception:
        cap = None
    if not cap:
        cap = 64 * 1024 * 1024  # conservative fallback = v7x physical
    return min((int(cap) * 3) // 4, 112 * 1024 * 1024)


def _pick_block_batch(B, in_p, out_p, requested=None):
    """16-aligned batch tile; sized by a ~8 MiB intermediate budget, capped so
    the grid has >= 2 steps (megacore sharding on v7x), and preferring a tile
    that divides B exactly (avoids the batch-pad HBM round-trip)."""
    B16 = _round_up(B, 16)
    if requested is None:
        per_row_bytes = 16 * (in_p + out_p)   # rough f32 temps + dbl-buffered io
        bm = (8 * 1024 * 1024) // per_row_bytes
        bm = min(bm, 2048)
    else:
        bm = requested
    bm = max(16, (bm // 16) * 16)             # bf16 packs 16 rows / vreg group
    cap = max(16, ((B16 // 2) // 16) * 16)    # >= 2 grid steps when possible
    bm = min(bm, cap)
    if B % bm:
        for cand in range(bm, 15, -16):
            if B % cand == 0:
                bm = cand
                break
    return bm


def agentzeka_forward(x, packed, *, block_batch=None, out_dtype=jnp.float32,
                      slice_output=True):
    """x: [B, in_features] float32 (or bf16). packed: output of pack_params.
    Set slice_output=False to get the lane-padded [B_pad, out_p] slab and skip
    the post-slice HBM round-trip."""
    B, in_f = x.shape
    assert in_f == packed["in_features"]
    in_p, out_p, out_f = packed["in_p"], packed["out_p"], packed["out_features"]
    compute_dtype = packed["compute_dtype"]

    bm = _pick_block_batch(B, in_p, out_p, block_batch)
    B_pad = _round_up(B, bm)

    x_p = x.astype(compute_dtype)
    if B_pad != B or in_p != in_f:
        x_p = jnp.pad(x_p, ((0, B_pad - B), (0, in_p - in_f)))

    grid = (B_pad // bm,)

    def x_map(i):
        return (i, 0)

    def rep_map(i):  # weights/biases replicated across batch tiles
        return (0, 0)

    # Grid-invariant weights/biases: single-buffered (DMA happens once, half
    # the VMEM residency of the default double buffering).
    weights = [packed["w_x"], packed["w_trn"], packed["w_hyp"],
               packed["w_ada"], packed["b_all"]]
    weight_specs = [
        pl.BlockSpec(w.shape, rep_map, pipeline_mode=pl.Buffered(1))
        for w in weights
    ]

    flops = 2 * B_pad * (in_p * (out_p + in_p)   # fused x matmul
                         + in_p * out_p          # trainer
                         + out_p * out_p         # hypertuner
                         + out_p * out_p)        # adaptive
    bytes_accessed = (x_p.size * x_p.dtype.itemsize
                      + sum(w.size * w.dtype.itemsize for w in weights)
                      + B_pad * out_p * jnp.dtype(out_dtype).itemsize)

    out = pl.pallas_call(
        functools.partial(_agentzeka_kernel, in_p=in_p, out_p=out_p),
        out_shape=jax.ShapeDtypeStruct((B_pad, out_p), out_dtype),
        grid=grid,
        in_specs=[pl.BlockSpec((bm, in_p), x_map)] + weight_specs,
        out_specs=pl.BlockSpec((bm, out_p), x_map),
        compiler_params=pltpu.CompilerParams(
            dimension_semantics=("parallel",),
            vmem_limit_bytes=_vmem_limit_bytes(),
        ),
        cost_estimate=pl.CostEstimate(
            flops=flops, transcendentals=0, bytes_accessed=bytes_accessed),
    )(x_p, *weights)

    if slice_output and (B_pad != B or out_p != out_f):
        out = out[:B, :out_f]
    return out


def _linear_init(key, fan_in, fan_out):
    """Deterministic PyTorch-style nn.Linear init (uniform +-1/sqrt(fan_in)).
    W stored as [fan_in, fan_out] (transposed from PyTorch), b as [1, fan_out]."""
    kw, kb = jax.random.split(key)
    bound = 1.0 / math.sqrt(fan_in)
    w = jax.random.uniform(kw, (fan_in, fan_out), jnp.float32, -bound, bound)
    b = jax.random.uniform(kb, (1, fan_out), jnp.float32, -bound, bound)
    return w, b


def init_params(key, in_features, out_features):
    k = jax.random.split(key, 5)
    w_lin, b_lin = _linear_init(k[0], in_features, out_features)
    w_pre, b_pre = _linear_init(k[1], in_features, in_features)
    w_trn, b_trn = _linear_init(k[2], in_features, out_features)
    w_hyp, b_hyp = _linear_init(k[3], out_features, out_features)
    w_ada, b_ada = _linear_init(k[4], out_features, out_features)
    return dict(
        w_lin=w_lin, b_lin=b_lin,
        w_pre=w_pre, b_pre=b_pre,
        w_trn=w_trn, b_trn=b_trn,
        w_hyp=w_hyp, b_hyp=b_hyp,
        w_ada=w_ada, b_ada=b_ada,
    )


def reference_forward(x, p, compute_dtype=jnp.bfloat16):
    """Pure-JAX reference: bf16 matmul inputs, f32 accumulation — the same
    numerics contract the kernel uses."""
    def mm(a, w):
        return jnp.dot(a.astype(compute_dtype), w.astype(compute_dtype),
                       preferred_element_type=jnp.float32)
    trad = mm(x, p["w_lin"]) + p["b_lin"]
    h = jnp.maximum(mm(x, p["w_pre"]) + p["b_pre"], 0.0)
    h = jnp.maximum(mm(h, p["w_trn"]) + p["b_trn"], 0.0)
    h = jnp.maximum(mm(h, p["w_hyp"]) + p["b_hyp"], 0.0)
    agent = mm(h, p["w_ada"]) + p["b_ada"]
    return (trad + agent) / 2.0


if __name__ == "__main__":
    key = jax.random.PRNGKey(0)
    k_x, k_p = jax.random.split(key)

    batch = 128
    in_features = 32
    out_features = 32

    x = jax.random.normal(k_x, (batch, in_features), jnp.float32)
    params = init_params(k_p, in_features, out_features)
    packed = pack_params(params)

    # Heuristic picks block_batch=64 -> grid of 2 steps (pipelining / megacore
    # path exercised), no batch padding.
    out = agentzeka_forward(x, packed)
    out = jax.block_until_ready(out)

    ref = reference_forward(x, params)
    assert out.shape == (batch, out_features)
    assert jnp.allclose(out, ref, atol=1e-2, rtol=1e-2), "mismatch vs reference"

    print("KERNEL_OK")
</pallas_src>

<mosaic_0001>
module attributes {stable_mosaic.version = 11 : i64} {
  func.func @_agentzeka_kernel(%arg0: i32, %arg1: memref<64x128xbf16, #tpu.memory_space<vmem>>, %arg2: memref<128x256xbf16, #tpu.memory_space<vmem>>, %arg3: memref<128x128xbf16, #tpu.memory_space<vmem>>, %arg4: memref<128x128xbf16, #tpu.memory_space<vmem>>, %arg5: memref<128x128xbf16, #tpu.memory_space<vmem>>, %arg6: memref<1x640xf32, #tpu.memory_space<vmem>>, %arg7: memref<64x128xf32, #tpu.memory_space<vmem>>) attributes {dimension_semantics = [#tpu.dimension_semantics<parallel>], iteration_bounds = array<i64: 2>, scalar_prefetch = 0 : i64, scratch_operands = 0 : i64, tpu.core_type = #tpu.core_type<tc>, window_params = [{transform_indices = @transform_0, window_bounds = array<i64: 64, 128>}, {pipeline_mode = #tpu.pipeline_mode<synchronous>, transform_indices = @transform_1, window_bounds = array<i64: 128, 256>}, {pipeline_mode = #tpu.pipeline_mode<synchronous>, transform_indices = @transform_2, window_bounds = array<i64: 128, 128>}, {pipeline_mode = #tpu.pipeline_mode<synchronous>, transform_indices = @transform_3, window_bounds = array<i64: 128, 128>}, {pipeline_mode = #tpu.pipeline_mode<synchronous>, transform_indices = @transform_4, window_bounds = array<i64: 128, 128>}, {pipeline_mode = #tpu.pipeline_mode<synchronous>, transform_indices = @transform_5, window_bounds = array<i64: 1, 640>}, {transform_indices = @transform_6, window_bounds = array<i64: 64, 128>}]} {
    %c0 = arith.constant 0 : index
    %c0_0 = arith.constant 0 : index
    %0 = vector.load %arg1[%c0, %c0_0] : memref<64x128xbf16, #tpu.memory_space<vmem>>, vector<64x128xbf16>
    %c0_1 = arith.constant 0 : index
    %c0_2 = arith.constant 0 : index
    %1 = vector.load %arg2[%c0_1, %c0_2] : memref<128x256xbf16, #tpu.memory_space<vmem>>, vector<128x256xbf16>
    %cst = arith.constant dense<0.000000e+00> : vector<64x256xf32>
    %2 = tpu.matmul %0, %1, %cst {dimension_numbers = #tpu.dot_dimension_numbers<[1], [0], [0], [1], [0, 0, 1, 1], [], []>} : vector<64x128xbf16>, vector<128x256xbf16>, vector<64x256xf32> -> vector<64x256xf32>
    %c0_3 = arith.constant 0 : index
    %c0_4 = arith.constant 0 : index
    %3 = vector.load %arg6[%c0_3, %c0_4] : memref<1x640xf32, #tpu.memory_space<vmem>>, vector<1x256xf32>
    %4 = vector.broadcast %3 : vector<1x256xf32> to vector<64x256xf32>
    %5 = arith.addf %2, %4 : vector<64x256xf32>
    %6 = vector.extract_strided_slice %5 {offsets = [0, 0], sizes = [64, 128], strides = [1, 1]} : vector<64x256xf32> to vector<64x128xf32>
    %7 = vector.extract_strided_slice %5 {offsets = [0, 128], sizes = [64, 128], strides = [1, 1]} : vector<64x256xf32> to vector<64x128xf32>
    %cst_5 = arith.constant 0.000000e+00 : f32
    %8 = vector.broadcast %cst_5 : f32 to vector<64x128xf32>
    %9 = arith.maximumf %7, %8 : vector<64x128xf32>
    %10 = arith.truncf %9 : vector<64x128xf32> to vector<64x128xbf16>
    %c0_6 = arith.constant 0 : index
    %c0_7 = arith.constant 0 : index
    %11 = vector.load %arg3[%c0_6, %c0_7] : memref<128x128xbf16, #tpu.memory_space<vmem>>, vector<128x128xbf16>
    %cst_8 = arith.constant dense<0.000000e+00> : vector<64x128xf32>
    %12 = tpu.matmul %10, %11, %cst_8 {dimension_numbers = #tpu.dot_dimension_numbers<[1], [0], [0], [1], [0, 0, 1, 1], [], []>} : vector<64x128xbf16>, vector<128x128xbf16>, vector<64x128xf32> -> vector<64x128xf32>
    %c0_9 = arith.constant 0 : index
    %c256 = arith.constant 256 : index
    %13 = vector.load %arg6[%c0_9, %c256] : memref<1x640xf32, #tpu.memory_space<vmem>>, vector<1x128xf32>
    %14 = vector.broadcast %13 : vector<1x128xf32> to vector<64x128xf32>
    %15 = arith.addf %12, %14 : vector<64x128xf32>
    %cst_10 = arith.constant 0.000000e+00 : f32
    %16 = vector.broadcast %cst_10 : f32 to vector<64x128xf32>
    %17 = arith.maximumf %15, %16 : vector<64x128xf32>
    %18 = arith.truncf %17 : vector<64x128xf32> to vector<64x128xbf16>
    %c0_11 = arith.constant 0 : index
    %c0_12 = arith.constant 0 : index
    %19 = vector.load %arg4[%c0_11, %c0_12] : memref<128x128xbf16, #tpu.memory_space<vmem>>, vector<128x128xbf16>
    %cst_13 = arith.constant dense<0.000000e+00> : vector<64x128xf32>
    %20 = tpu.matmul %18, %19, %cst_13 {dimension_numbers = #tpu.dot_dimension_numbers<[1], [0], [0], [1], [0, 0, 1, 1], [], []>} : vector<64x128xbf16>, vector<128x128xbf16>, vector<64x128xf32> -> vector<64x128xf32>
    %c0_14 = arith.constant 0 : index
    %c384 = arith.constant 384 : index
    %21 = vector.load %arg6[%c0_14, %c384] : memref<1x640xf32, #tpu.memory_space<vmem>>, vector<1x128xf32>
    %22 = vector.broadcast %21 : vector<1x128xf32> to vector<64x128xf32>
    %23 = arith.addf %20, %22 : vector<64x128xf32>
    %cst_15 = arith.constant 0.000000e+00 : f32
    %24 = vector.broadcast %cst_15 : f32 to vector<64x128xf32>
    %25 = arith.maximumf %23, %24 : vector<64x128xf32>
    %26 = arith.truncf %25 : vector<64x128xf32> to vector<64x128xbf16>
    %c0_16 = arith.constant 0 : index
    %c0_17 = arith.constant 0 : index
    %27 = vector.load %arg5[%c0_16, %c0_17] : memref<128x128xbf16, #tpu.memory_space<vmem>>, vector<128x128xbf16>
    %cst_18 = arith.constant dense<0.000000e+00> : vector<64x128xf32>
    %28 = tpu.matmul %26, %27, %cst_18 {dimension_numbers = #tpu.dot_dimension_numbers<[1], [0], [0], [1], [0, 0, 1, 1], [], []>} : vector<64x128xbf16>, vector<128x128xbf16>, vector<64x128xf32> -> vector<64x128xf32>
    %c0_19 = arith.constant 0 : index
    %c512 = arith.constant 512 : index
    %29 = vector.load %arg6[%c0_19, %c512] : memref<1x640xf32, #tpu.memory_space<vmem>>, vector<1x128xf32>
    %30 = vector.broadcast %29 : vector<1x128xf32> to vector<64x128xf32>
    %31 = arith.addf %28, %30 : vector<64x128xf32>
    %32 = arith.addf %6, %31 : vector<64x128xf32>
    %c0_20 = arith.constant 0 : index
    %c0_21 = arith.constant 0 : index
    %33 = vector.load %arg7[%c0_20, %c0_21] : memref<64x128xf32, #tpu.memory_space<vmem>>, vector<64x128xf32>
    tpu.vector_store %arg7[%c0_20, %c0_21], %32 {strides = array<i32>} : memref<64x128xf32, #tpu.memory_space<vmem>>, vector<64x128xf32>,
    return
  }
  func.func @transform_0(%arg0: i32) -> (i32, i32) {
    %c0_i32 = arith.constant 0 : i32
    %c0_i32_0 = arith.constant 0 : i32
    return %arg0, %c0_i32 : i32, i32
  }
  func.func @transform_1(%arg0: i32) -> (i32, i32) {
    %c0_i32 = arith.constant 0 : i32
    %c0_i32_0 = arith.constant 0 : i32
    %c0_i32_1 = arith.constant 0 : i32
    return %c0_i32, %c0_i32_0 : i32, i32
  }
  func.func @transform_2(%arg0: i32) -> (i32, i32) {
    %c0_i32 = arith.constant 0 : i32
    %c0_i32_0 = arith.constant 0 : i32
    %c0_i32_1 = arith.constant 0 : i32
    return %c0_i32, %c0_i32_0 : i32, i32
  }
  func.func @transform_3(%arg0: i32) -> (i32, i32) {
    %c0_i32 = arith.constant 0 : i32
    %c0_i32_0 = arith.constant 0 : i32
    %c0_i32_1 = arith.constant 0 : i32
    return %c0_i32, %c0_i32_0 : i32, i32
  }
  func.func @transform_4(%arg0: i32) -> (i32, i32) {
    %c0_i32 = arith.constant 0 : i32
    %c0_i32_0 = arith.constant 0 : i32
    %c0_i32_1 = arith.constant 0 : i32
    return %c0_i32, %c0_i32_0 : i32, i32
  }
  func.func @transform_5(%arg0: i32) -> (i32, i32) {
    %c0_i32 = arith.constant 0 : i32
    %c0_i32_0 = arith.constant 0 : i32
    %c0_i32_1 = arith.constant 0 : i32
    return %c0_i32, %c0_i32_0 : i32, i32
  }
  func.func @transform_6(%arg0: i32) -> (i32, i32) {
    %c0_i32 = arith.constant 0 : i32
    %c0_i32_0 = arith.constant 0 : i32
    return %arg0, %c0_i32 : i32, i32
  }
}

</mosaic_0001>

<llo_original>
// kernel: tpu_custom_call.1
$region0: #{tpu_custom_call.1}
  #allocation0 [shape = 'u32[]', space=smem, size = 0x4, offset = 0x4, fixed_abs, tag = 'smem constant byte address 0x4 - core index']
  #allocation1 [shape = 'u32[144,128]{1,0:T(1,128)}', space=vmem, size = 0x12000, scoped, tag = 'internal scratch']
  %s0 = inlined_call_operand.hbm [shape: bf16[128,128], index: 0, kind: input, shape index: {}]
  %s1 = inlined_call_operand.hbm [shape: bf16[128,256], index: 1, kind: input, shape index: {}]
  %s2 = inlined_call_operand.hbm [shape: bf16[128,128], index: 2, kind: input, shape index: {}]
  %s3 = inlined_call_operand.hbm [shape: bf16[128,128], index: 3, kind: input, shape index: {}]
  %s4 = inlined_call_operand.hbm [shape: bf16[128,128], index: 4, kind: input, shape index: {}]
  %s5 = inlined_call_operand.vmem [shape: f32[1,640], index: 5, kind: input, shape index: {}]
  %s6 = inlined_call_operand.hbm [shape: f32[128,128], index: 6, kind: output, shape index: {}]
  %s7 = sld [smem:[#allocation0]]
  $region77: #{tpu_custom_call.1} parent=0
    _
  %s9 = ssub.s32 1, %s7
  %s10 = scalar_select 0, %s9, %s7
  $region1: #{tpu_custom_call.1} parent=0
    #allocation2 [shape = 'u8[32768]{0}', space=vmem, size = 0x8000, scoped, tag = 'input window, operand 0']
    #allocation3 [shape = 's32[2]{0}', space=sflag, size = 0x8, scoped, tag = 'scoped memory for tpu_custom_call.1']
    #allocation4 [shape = 's32[2]{0}', space=sflag, size = 0x8, scoped, tag = 'scoped memory for tpu_custom_call.1']
    #allocation5 [shape = 'u8[65536]{0}', space=vmem, size = 0x10000, scoped, tag = 'input window, operand 1, single buffered']
    #allocation6 [shape = 's32[1]{0}', space=sflag, size = 0x4, scoped, tag = 'scoped memory for tpu_custom_call.1']
    #allocation7 [shape = 'u8[32768]{0}', space=vmem, size = 0x8000, scoped, tag = 'input window, operand 2, single buffered']
    #allocation8 [shape = 'u8[32768]{0}', space=vmem, size = 0x8000, scoped, tag = 'input window, operand 3, single buffered']
    #allocation9 [shape = 's32[1]{0}', space=sflag, size = 0x4, scoped, tag = 'scoped memory for tpu_custom_call.1']
    #allocation10 [shape = 'u8[32768]{0}', space=vmem, size = 0x8000, scoped, tag = 'input window, operand 4, single buffered']
    #allocation11 [shape = 'u8[65536]{0}', space=vmem, size = 0x10000, scoped, tag = 'output window, operand 0']
    %11 = vsyncpa [#allocation3], 0
    %s12 = scalar_lea.sflag [#allocation3], 1
    %13 = vsyncpa %s12, 0
    %14 = vsyncpa [#allocation6], 0
    %15 = vsyncpa [#allocation9], 0
    %16 = vsyncpa [#allocation4], 0
    %s17 = scalar_lea.sflag [#allocation4], 1
    %18 = vsyncpa %s17, 0
    loop: start=0, step=1, limit=4
    $region2: #{tpu_custom_call.1} parent=1 // loop_pre_header
      _
    $region3: #{tpu_custom_call.1} parent=1 // loop_header
      %s20 = sphi 0, %s24
      %p21 = scmp.ge.s32.totalorder %s20, 4
      %s30 = sphi 0, %s32
      %s33 = sphi 0, %s30
      %s34 = sphi 0, %s33
      %s50 = sphi 0, %s34
      %s54 = sphi 0, %s54
      %s56 = sphi 0, %s54
      %s57 = sphi 0, %s56
      %s71 = sphi 0, %s57
      %s75 = sphi 0, %s75
      %s77 = sphi 0, %s75
      %s78 = sphi 0, %s77
      %s92 = sphi 0, %s78
      %s96 = sphi 0, %s96
      %s98 = sphi 0, %s96
      %s99 = sphi 0, %s98
      %s113 = sphi 0, %s99
      %s117 = sphi 0, %s117
      %s119 = sphi 0, %s117
      %s120 = sphi 0, %s119
      %s134 = sphi 0, %s120
      %s138 = sphi 0, %s138
      %s140 = sphi 0, %s138
      %s141 = sphi 0, %s140
      %s155 = sphi 0, %s141
      %s161 = sphi 0, %s163
      %s164 = sphi 0, %s161
      %s165 = sphi 0, %s164
      %s181 = sphi 0, %s165
    $region4: #{tpu_custom_call.1} parent=1 // loop_header_branch
      %23 = sbr.rel (%p21) target = $region8
    $region5: #{tpu_custom_call.1} parent=1 // loop_body
      %s25 = ssub.s32 %s20, 1
      %s26 = ssub.s32 %s20, 2
      %s27 = sadd.s32 %s20, 1
      %s28 = ssub.s32 %s20, %s27
      %p29 = scmp.eq.s32.totalorder %s28, 0
      %s31 = sadd.s32 %s30, 1
      %s32 = scalar_select %p29, %s30, %s31
      %p35 = pneg %p29
      %p36 = scmp.eq.s32.totalorder %s20, 1
      %p37 = por %p35, %p36
      %p38 = scmp.ne.s32.totalorder %s30, %s33
      %p39 = scmp.eq.s32.totalorder %s20, 0
      %p40 = por %p38, %p39
      %p41 = scmp.ne.s32.totalorder %s30, %s33
      %p42 = scmp.eq.s32.totalorder %s25, 1
      %p43 = por %p41, %p42
      %p44 = scmp.ne.s32.totalorder %s33, %s34
      %p45 = scmp.eq.s32.totalorder %s25, 0
      %p46 = por %p44, %p45
      %p47 = scmp.ne.s32.totalorder %s33, %s34
      %p48 = scmp.eq.s32.totalorder %s26, 1
      %p49 = por %p47, %p48
      %p51 = scmp.ne.s32.totalorder %s34, %s50
      %p52 = scmp.eq.s32.totalorder %s26, 0
      %p53 = por %p51, %p52
      %s55 = sadd.s32 %s54, 1
      %p58 = scmp.eq.s32.totalorder %s20, 1
      %p59 = scmp.ne.s32.totalorder %s54, %s56
      %p60 = scmp.eq.s32.totalorder %s20, 0
      %p61 = por %p59, %p60
      %p62 = scmp.ne.s32.totalorder %s54, %s56
      %p63 = scmp.eq.s32.totalorder %s25, 1
      %p64 = por %p62, %p63
      %p65 = scmp.ne.s32.totalorder %s56, %s57
      %p66 = scmp.eq.s32.totalorder %s25, 0
      %p67 = por %p65, %p66
      %p68 = scmp.ne.s32.totalorder %s56, %s57
      %p69 = scmp.eq.s32.totalorder %s26, 1
      %p70 = por %p68, %p69
      %p72 = scmp.ne.s32.totalorder %s57, %s71
      %p73 = scmp.eq.s32.totalorder %s26, 0
      %p74 = por %p72, %p73
      %s76 = sadd.s32 %s75, 1
      %p79 = scmp.eq.s32.totalorder %s20, 1
      %p80 = scmp.ne.s32.totalorder %s75, %s77
      %p81 = scmp.eq.s32.totalorder %s20, 0
      %p82 = por %p80, %p81
      %p83 = scmp.ne.s32.totalorder %s75, %s77
      %p84 = scmp.eq.s32.totalorder %s25, 1
      %p85 = por %p83, %p84
      %p86 = scmp.ne.s32.totalorder %s77, %s78
      %p87 = scmp.eq.s32.totalorder %s25, 0
      %p88 = por %p86, %p87
      %p89 = scmp.ne.s32.totalorder %s77, %s78
      %p90 = scmp.eq.s32.totalorder %s26, 1
      %p91 = por %p89, %p90
      %p93 = scmp.ne.s32.totalorder %s78, %s92
      %p94 = scmp.eq.s32.totalorder %s26, 0
      %p95 = por %p93, %p94
      %s97 = sadd.s32 %s96, 1
      %p100 = scmp.eq.s32.totalorder %s20, 1
      %p101 = scmp.ne.s32.totalorder %s96, %s98
      %p102 = scmp.eq.s32.totalorder %s20, 0
      %p103 = por %p101, %p102
      %p104 = scmp.ne.s32.totalorder %s96, %s98
      %p105 = scmp.eq.s32.totalorder %s25, 1
      %p106 = por %p104, %p105
      %p107 = scmp.ne.s32.totalorder %s98, %s99
      %p108 = scmp.eq.s32.totalorder %s25, 0
      %p109 = por %p107, %p108
      %p110 = scmp.ne.s32.totalorder %s98, %s99
      %p111 = scmp.eq.s32.totalorder %s26, 1
      %p112 = por %p110, %p111
      %p114 = scmp.ne.s32.totalorder %s99, %s113
      %p115 = scmp.eq.s32.totalorder %s26, 0
      %p116 = por %p114, %p115
      %s118 = sadd.s32 %s117, 1
      %p121 = scmp.eq.s32.totalorder %s20, 1
      %p122 = scmp.ne.s32.totalorder %s117, %s119
      %p123 = scmp.eq.s32.totalorder %s20, 0
      %p124 = por %p122, %p123
      %p125 = scmp.ne.s32.totalorder %s117, %s119
      %p126 = scmp.eq.s32.totalorder %s25, 1
      %p127 = por %p125, %p126
      %p128 = scmp.ne.s32.totalorder %s119, %s120
      %p129 = scmp.eq.s32.totalorder %s25, 0
      %p130 = por %p128, %p129
      %p131 = scmp.ne.s32.totalorder %s119, %s120
      %p132 = scmp.eq.s32.totalorder %s26, 1
      %p133 = por %p131, %p132
      %p135 = scmp.ne.s32.totalorder %s120, %s134
      %p136 = scmp.eq.s32.totalorder %s26, 0
      %p137 = por %p135, %p136
      %s139 = sadd.s32 %s138, 1
      %p142 = scmp.eq.s32.totalorder %s20, 1
      %p143 = scmp.ne.s32.totalorder %s138, %s140
      %p144 = scmp.eq.s32.totalorder %s20, 0
      %p145 = por %p143, %p144
      %p146 = scmp.ne.s32.totalorder %s138, %s140
      %p147 = scmp.eq.s32.totalorder %s25, 1
      %p148 = por %p146, %p147
      %p149 = scmp.ne.s32.totalorder %s140, %s141
      %p150 = scmp.eq.s32.totalorder %s25, 0
      %p151 = por %p149, %p150
      %p152 = scmp.ne.s32.totalorder %s140, %s141
      %p153 = scmp.eq.s32.totalorder %s26, 1
      %p154 = por %p152, %p153
      %p156 = scmp.ne.s32.totalorder %s141, %s155
      %p157 = scmp.eq.s32.totalorder %s26, 0
      %p158 = por %p156, %p157
      %s159 = ssub.s32 %s20, %s27
      %p160 = scmp.eq.s32.totalorder %s159, 0
      %s162 = sadd.s32 %s161, 1
      %s163 = scalar_select %p160, %s161, %s162
      %p166 = pneg %p160
      %p167 = scmp.eq.s32.totalorder %s20, 1
      %p168 = por %p166, %p167
      %p169 = scmp.ne.s32.totalorder %s161, %s164
      %p170 = scmp.eq.s32.totalorder %s20, 0
      %p171 = por %p169, %p170
      %p172 = scmp.ne.s32.totalorder %s161, %s164
      %p173 = scmp.eq.s32.totalorder %s25, 1
      %p174 = por %p172, %p173
      %p175 = scmp.ne.s32.totalorder %s164, %s165
      %p176 = scmp.eq.s32.totalorder %s25, 0
      %p177 = por %p175, %p176
      %p178 = scmp.ne.s32.totalorder %s164, %s165
      %p179 = scmp.eq.s32.totalorder %s26, 1
      %p180 = por %p178, %p179
      %p182 = scmp.ne.s32.totalorder %s165, %s181
      %p183 = scmp.eq.s32.totalorder %s26, 0
      %p184 = por %p182, %p183
      %p185 = scmp.le.s32.totalorder 1, %s20
      %p186 = scmp.lt.s32.totalorder %s20, 3
      %p187 = pnand %p185, %p186
      %p188 = pneg %p187
      // Predicated region
      $region9: #{tpu_custom_call.1} parent=5 // pred_check
        _
      $region10: #{tpu_custom_call.1} parent=5 // pred_check_branch
        %190 = sbr.rel (%p187) target = $region12
      $region11: #{tpu_custom_call.1} parent=5 // pred_region
        %s191 = ssub.s32 %s20, 1
        // Predicated region
        $region13: #{tpu_custom_call.1} parent=11 // pred_check
          %p192 = pneg %p67
        $region14: #{tpu_custom_call.1} parent=11 // pred_check_branch
          %194 = sbr.rel (%p192) target = $region16
        $region15: #{tpu_custom_call.1} parent=11 // pred_region
          %s196 = ssub.s32 2048, 2048
          %197 = vsyncadd [#allocation6], %s196
          %s198 = sshll.u32 [#allocation5], 4
          %s199 = int_to_ptr.vmem [resolvable:$true] %s198
          %204 = dma.hbm_to_vmem [thread:$0]  %s1, 2048, %s199, [#allocation6], 128, 128, 8
        $region16: #{tpu_custom_call.1} parent=11 // pred_fallthru
          _
        // Predicated region
        $region17: #{tpu_custom_call.1} parent=11 // pred_check
          %p205 = pneg %p88
        $region18: #{tpu_custom_call.1} parent=11 // pred_check_branch
          %207 = sbr.rel (%p205) target = $region20
        $region19: #{tpu_custom_call.1} parent=11 // pred_region
          %s209 = ssub.s32 1024, 1024
          %210 = vsyncadd [#allocation6], %s209
          %s211 = sshll.u32 [#allocation7], 4
          %s212 = int_to_ptr.vmem [resolvable:$true] %s211
          %217 = dma.hbm_to_vmem [thread:$0]  %s2, 1024, %s212, [#allocation6], 64, 64, 4
        $region20: #{tpu_custom_call.1} parent=11 // pred_fallthru
          _
        // Predicated region
        $region21: #{tpu_custom_call.1} parent=11 // pred_check
          %p218 = pneg %p109
        $region22: #{tpu_custom_call.1} parent=11 // pred_check_branch
          %220 = sbr.rel (%p218) target = $region24
        $region23: #{tpu_custom_call.1} parent=11 // pred_region
          %s222 = ssub.s32 1024, 1024
          %223 = vsyncadd [#allocation9], %s222
          %s224 = sshll.u32 [#allocation8], 4
          %s225 = int_to_ptr.vmem [resolvable:$true] %s224
          %230 = dma.hbm_to_vmem [thread:$0]  %s3, 1024, %s225, [#allocation9], 64, 64, 4
        $region24: #{tpu_custom_call.1} parent=11 // pred_fallthru
          _
        // Predicated region
        $region25: #{tpu_custom_call.1} parent=11 // pred_check
          %p231 = pneg %p130
        $region26: #{tpu_custom_call.1} parent=11 // pred_check_branch
          %233 = sbr.rel (%p231) target = $region28
        $region27: #{tpu_custom_call.1} parent=11 // pred_region
          %s235 = ssub.s32 1024, 1024
          %236 = vsyncadd [#allocation9], %s235
          %s237 = sshll.u32 [#allocation10], 4
          %s238 = int_to_ptr.vmem [resolvable:$true] %s237
          %243 = dma.hbm_to_vmem [thread:$0]  %s4, 1024, %s238, [#allocation9], 64, 64, 4
        $region28: #{tpu_custom_call.1} parent=11 // pred_fallthru
          _
        // Predicated region
        $region29: #{tpu_custom_call.1} parent=11 // pred_check
          %p244 = pneg %p151
        $region30: #{tpu_custom_call.1} parent=11 // pred_check_branch
          %246 = sbr.rel (%p244) target = $region32
        $region31: #{tpu_custom_call.1} parent=11 // pred_region
          _
        $region32: #{tpu_custom_call.1} parent=11 // pred_fallthru
          _
      $region12: #{tpu_custom_call.1} parent=5 // pred_fallthru
        _
      %p247 = scmp.lt.s32.totalorder %s20, 2
      // Predicated region
      $region33: #{tpu_custom_call.1} parent=5 // pred_check
        %p248 = pneg %p247
      $region34: #{tpu_custom_call.1} parent=5 // pred_check_branch
        %250 = sbr.rel (%p248) target = $region36
      $region35: #{tpu_custom_call.1} parent=5 // pred_region
        // Predicated region
        $region37: #{tpu_custom_call.1} parent=35 // pred_check
          %p251 = pneg %p40
        $region38: #{tpu_custom_call.1} parent=35 // pred_check_branch
          %253 = sbr.rel (%p251) target = $region40
        $region39: #{tpu_custom_call.1} parent=35 // pred_region
          %s254 = sand.u32 %s30, 1
          %s255 = scalar_lea.sflag [#allocation3], %s254
          %s256 = sand.u32 %s30, 1
          %s257 = smul.addr %s256, 32
          %s258 = scalar_lea.vmem [#allocation2], %s257
          %s259 = smul.u32 8, %s20
          %s261 = ssub.s32 512, 512
          %262 = vsyncadd %s255, %s261
          %s263 = smul.addr %s259, 64
          %s264 = scalar_lea.hbm %s0, %s263
          %s265 = sshll.u32 %s258, 4
          %s266 = int_to_ptr.vmem [resolvable:$true] %s265
          %271 = dma.hbm_to_vmem [thread:$0]  %s264, 512, %s266, %s255, 64, 64, 4
        $region40: #{tpu_custom_call.1} parent=35 // pred_fallthru
          _
      $region36: #{tpu_custom_call.1} parent=5 // pred_fallthru
        _
      %p272 = scmp.le.s32.totalorder 1, %s20
      %p273 = scmp.lt.s32.totalorder %s20, 3
      %p274 = pnand %p272, %p273
      %p275 = pneg %p274
      // Predicated region
      $region41: #{tpu_custom_call.1} parent=5 // pred_check
        _
      $region42: #{tpu_custom_call.1} parent=5 // pred_check_branch
        %277 = sbr.rel (%p274) target = $region44
      $region43: #{tpu_custom_call.1} parent=5 // pred_region
        %s278 = ssub.s32 %s20, 1
        %s279 = sand.u32 %s33, 1
        %s280 = scalar_lea.sflag [#allocation3], %s279
        %s281 = sand.u32 %s33, 1
        %s282 = smul.addr %s281, 32
        %s283 = scalar_lea.vmem [#allocation2], %s282
        // Predicated region
        $region45: #{tpu_custom_call.1} parent=43 // pred_check
          %p284 = pneg %p46
        $region46: #{tpu_custom_call.1} parent=43 // pred_check_branch
          %286 = sbr.rel (%p284) target = $region48
        $region47: #{tpu_custom_call.1} parent=43 // pred_region
          %287 = dma.done %s280, 512
        $region48: #{tpu_custom_call.1} parent=43 // pred_fallthru
          _
        // Predicated region
        $region49: #{tpu_custom_call.1} parent=43 // pred_check
          %p288 = pneg %p67
        $region50: #{tpu_custom_call.1} parent=43 // pred_check_branch
          %290 = sbr.rel (%p288) target = $region52
        $region51: #{tpu_custom_call.1} parent=43 // pred_region
          %291 = dma.done [#allocation6], 2048
        $region52: #{tpu_custom_call.1} parent=43 // pred_fallthru
          _
        // Predicated region
        $region53: #{tpu_custom_call.1} parent=43 // pred_check
          %p292 = pneg %p88
        $region54: #{tpu_custom_call.1} parent=43 // pred_check_branch
          %294 = sbr.rel (%p292) target = $region56
        $region55: #{tpu_custom_call.1} parent=43 // pred_region
          %295 = dma.done [#allocation6], 1024
        $region56: #{tpu_custom_call.1} parent=43 // pred_fallthru
          _
        // Predicated region
        $region57: #{tpu_custom_call.1} parent=43 // pred_check
          %p296 = pneg %p109
        $region58: #{tpu_custom_call.1} parent=43 // pred_check_branch
          %298 = sbr.rel (%p296) target = $region60
        $region59: #{tpu_custom_call.1} parent=43 // pred_region
          %299 = dma.done [#allocation9], 1024
        $region60: #{tpu_custom_call.1} parent=43 // pred_fallthru
          _
        // Predicated region
        $region61: #{tpu_custom_call.1} parent=43 // pred_check
          %p300 = pneg %p130
        $region62: #{tpu_custom_call.1} parent=43 // pred_check_branch
          %302 = sbr.rel (%p300) target = $region64
        $region63: #{tpu_custom_call.1} parent=43 // pred_region
          %303 = dma.done [#allocation9], 1024
        $region64: #{tpu_custom_call.1} parent=43 // pred_fallthru
          _
        %s304 = sand.u32 %s33, 1
        %s305 = scalar_lea.sflag [#allocation3], %s304
        %s306 = sand.u32 %s33, 1
        %s307 = smul.addr %s306, 32
        %s308 = scalar_lea.vmem [#allocation2], %s307
        %p309 = pneg %p46
        %p310 = pneg %p43
        %p311 = pneg %p67
        %p312 = pneg %p64
        %p313 = pneg %p88
        %p314 = pneg %p85
        %p315 = pneg %p109
        %p316 = pneg %p106
        %p317 = pneg %p130
        %p318 = pneg %p127
        %p319 = pneg %p151
        %p320 = pneg %p148
        %p321 = pneg %p177
        %p322 = pneg %p174
        %s323 = sand.u32 %s164, 1
        %s324 = scalar_lea.sflag [#allocation4], %s323
        %s325 = sand.u32 %s164, 1
        %s326 = smul.addr %s325, 64
        %s327 = scalar_lea.vmem [#allocation11], %s326
        %s328 = smul.u32 8, %s25
        %s329 = smul.u32 8, %s25
        %v331 = vld [vmem:[%s283] sm:$0xf]
        %v332 = vld [vmem:[%s283 + $0x4] sm:$0xf]
        %v333 = vld [vmem:[%s283 + $0x8] sm:$0xf]
        %v334 = vld [vmem:[%s283 + $0xc] sm:$0xf]
        %v335 = vld [vmem:[%s283 + $0x10] sm:$0xf]
        %v336 = vld [vmem:[%s283 + $0x14] sm:$0xf]
        %v337 = vld [vmem:[%s283 + $0x18] sm:$0xf]
        %v338 = vld [vmem:[%s283 + $0x1c] sm:$0xf]
        %v339 = vld [vmem:[#allocation5] sm:$0xff]
        %v340 = vld [vmem:[#allocation5 + $0x8] sm:$0xff]
        %v341 = vld [vmem:[#allocation5 + $0x10] sm:$0xff]
        %v342 = vld [vmem:[#allocation5 + $0x18] sm:$0xff]
        %v343 = vld [vmem:[#allocation5 + $0x20] sm:$0xff]
        %v344 = vld [vmem:[#allocation5 + $0x28] sm:$0xff]
        %v345 = vld [vmem:[#allocation5 + $0x30] sm:$0xff]
        %v346 = vld [vmem:[#allocation5 + $0x38] sm:$0xff]
        %v347 = vld [vmem:[#allocation5 + $0x40] sm:$0xff]
        %v348 = vld [vmem:[#allocation5 + $0x48] sm:$0xff]
        %v349 = vld [vmem:[#allocation5 + $0x50] sm:$0xff]
        %v350 = vld [vmem:[#allocation5 + $0x58] sm:$0xff]
        %v351 = vld [vmem:[#allocation5 + $0x60] sm:$0xff]
        %v352 = vld [vmem:[#allocation5 + $0x68] sm:$0xff]
        %v353 = vld [vmem:[#allocation5 + $0x70] sm:$0xff]
        %v354 = vld [vmem:[#allocation5 + $0x78] sm:$0xff]
        %v355 = vld [vmem:[%s5] sm:$0x3]
        %v357 = vlaneseq
        %v358 = vshrl.u32 %v357, 7
        %v359 = vsub.s32 0, %v358
        %v360 = vrot.slane %v355, %v359
        %v361 = vlaneseq
        %v362 = vshrl.u32 %v361, 7
        %v363 = vsub.s32 1, %v362
        %v364 = vrot.slane %v355, %v363
        %v375 = vunpack.c.l.b16 %v331
        %v376 = vunpack.c.l.b16 %v332
        %v377 = vunpack.c.l.b16 %v333
        %v378 = vunpack.c.l.b16 %v334
        %v379 = vunpack.c.l.b16 %v335
        %v380 = vunpack.c.l.b16 %v336
        %v381 = vunpack.c.l.b16 %v337
        %v382 = vunpack.c.l.b16 %v338
        %v383 = vpack.c.b16 %v376, %v375
        %v384 = vpack.c.b16 %v378, %v377
        %v385 = vpack.c.b16 %v380, %v379
        %v386 = vpack.c.b16 %v382, %v381
        %v407 = vunpack.c.l.b16 %v339
        %v408 = vunpack.c.h.b16 %v339
        %v409 = vunpack.c.l.b16 %v340
        %v410 = vunpack.c.h.b16 %v340
        %v411 = vunpack.c.l.b16 %v341
        %v412 = vunpack.c.h.b16 %v341
        %v413 = vunpack.c.l.b16 %v342
        %v414 = vunpack.c.h.b16 %v342
        %v415 = vunpack.c.l.b16 %v343
        %v416 = vunpack.c.h.b16 %v343
        %v417 = vunpack.c.l.b16 %v344
        %v418 = vunpack.c.h.b16 %v344
        %v419 = vunpack.c.l.b16 %v345
        %v420 = vunpack.c.h.b16 %v345
        %v421 = vunpack.c.l.b16 %v346
        %v422 = vunpack.c.h.b16 %v346
        %v423 = vunpack.c.l.b16 %v347
        %v424 = vunpack.c.h.b16 %v347
        %v425 = vunpack.c.l.b16 %v348
        %v426 = vunpack.c.h.b16 %v348
        %v427 = vunpack.c.l.b16 %v349
        %v428 = vunpack.c.h.b16 %v349
        %v429 = vunpack.c.l.b16 %v350
        %v430 = vunpack.c.h.b16 %v350
        %v431 = vunpack.c.l.b16 %v351
        %v432 = vunpack.c.h.b16 %v351
        %v433 = vunpack.c.l.b16 %v352
        %v434 = vunpack.c.h.b16 %v352
        %v435 = vunpack.c.l.b16 %v353
        %v436 = vunpack.c.h.b16 %v353
        %v437 = vunpack.c.l.b16 %v354
        %v438 = vunpack.c.h.b16 %v354
        %v439 = vpack.c.b16 %v409, %v407
        %v440 = vpack.c.b16 %v410, %v408
        %v441 = vpack.c.b16 %v413, %v411
        %v442 = vpack.c.b16 %v414, %v412
        %v443 = vpack.c.b16 %v417, %v415
        %v444 = vpack.c.b16 %v418, %v416
        %v445 = vpack.c.b16 %v421, %v419
        %v446 = vpack.c.b16 %v422, %v420
        %v447 = vpack.c.b16 %v425, %v423
        %v448 = vpack.c.b16 %v426, %v424
        %v449 = vpack.c.b16 %v429, %v427
        %v450 = vpack.c.b16 %v430, %v428
        %v451 = vpack.c.b16 %v433, %v431
        %v452 = vpack.c.b16 %v434, %v432
        %v453 = vpack.c.b16 %v437, %v435
        %v454 = vpack.c.b16 %v438, %v436
        %471 = vmatprep.subr.bf16.mxu0 %v440
        %472 = vmatpush1.bf16.msra.mxu0 %v439
        %473 = vmatprep.subr.bf16.mxu0 %v442
        %474 = vmatpush1.bf16.msra.mxu0 %v441
        %475 = vmatprep.subr.bf16.mxu0 %v444
        %476 = vmatpush1.bf16.msra.mxu0 %v443
        %477 = vmatprep.subr.bf16.mxu0 %v446
        %478 = vmatpush1.bf16.msra.mxu0 %v445
        %479 = vmatprep.subr.bf16.mxu0 %v448
        %480 = vmatpush1.bf16.msra.mxu0 %v447
        %481 = vmatprep.subr.bf16.mxu0 %v450
        %482 = vmatpush1.bf16.msra.mxu0 %v449
        %483 = vmatprep.subr.bf16.mxu0 %v452
        %484 = vmatpush1.bf16.msra.mxu0 %v451
        %485 = vmatprep.subr.bf16.mxu0 %v454
        %486 = vmatpush1.bf16.msra.mxu0 %v453
        %487 = vmatprep.subr.bf16.mxu0 0
        %488 = vmatpush1.bf16.msra.mxu0 0
        %489 = vmatprep.subr.bf16.mxu0 0
        %490 = vmatpush1.bf16.msra.mxu0 0
        %491 = vmatprep.subr.bf16.mxu0 0
        %492 = vmatpush1.bf16.msra.mxu0 0
        %493 = vmatprep.subr.bf16.mxu0 0
        %494 = vmatpush1.bf16.msra.mxu0 0
        %495 = vmatprep.subr.bf16.mxu0 0
        %496 = vmatpush1.bf16.msra.mxu0 0
        %497 = vmatprep.subr.bf16.mxu0 0
        %498 = vmatpush1.bf16.msra.mxu0 0
        %499 = vmatprep.subr.bf16.mxu0 0
        %500 = vmatpush1.bf16.msra.mxu0 0
        %501 = vmatprep.subr.bf16.mxu0 0
        %502 = vmatpush1.bf16.msra.mxu0 0
        %503 = vmatprep.mubr.bf16.mxu0 0
        %504 = vmatmul.mubr.bf16.gmra.mrb[0].mxu0 %v383
        %v505 = vpop.f32.mrb[0].mxu0
        %v506 = vadd.f32 %v360, %v505
        %v507 = vpop.f32.mrb[0].mxu0
        %v508 = vadd.f32 %v364, %v507
        %v509 = vpop.f32.mrb[0].mxu0
        %v510 = vadd.f32 %v360, %v509
        %v511 = vpop.f32.mrb[0].mxu0
        %v512 = vadd.f32 %v364, %v511
        %513 = vmatprep.mubr.bf16.mxu0 0
        %514 = vmatmul.mubr.bf16.gmra.mrb[0].mxu0 %v384
        %v515 = vpop.f32.mrb[0].mxu0
        %v516 = vadd.f32 %v360, %v515
        %v517 = vpop.f32.mrb[0].mxu0
        %v518 = vadd.f32 %v364, %v517
        %v519 = vpop.f32.mrb[0].mxu0
        %v520 = vadd.f32 %v360, %v519
        %v521 = vpop.f32.mrb[0].mxu0
        %v522 = vadd.f32 %v364, %v521
        %523 = vmatprep.mubr.bf16.mxu0 0
        %524 = vmatmul.mubr.bf16.gmra.mrb[0].mxu0 %v385
        %v525 = vpop.f32.mrb[0].mxu0
        %v526 = vadd.f32 %v360, %v525
        %v527 = vpop.f32.mrb[0].mxu0
        %v528 = vadd.f32 %v364, %v527
        %v529 = vpop.f32.mrb[0].mxu0
        %v530 = vadd.f32 %v360, %v529
        %v531 = vpop.f32.mrb[0].mxu0
        %v532 = vadd.f32 %v364, %v531
        %533 = vmatprep.mubr.bf16.mxu0 0
        %534 = vmatmul.mubr.bf16.gmra.mrb[0].mxu0 %v386
        %v535 = vpop.f32.mrb[0].mxu0
        %v536 = vadd.f32 %v360, %v535
        %v537 = vpop.f32.mrb[0].mxu0
        %v538 = vadd.f32 %v364, %v537
        %v539 = vpop.f32.mrb[0].mxu0
        %v540 = vadd.f32 %v360, %v539
        %v541 = vpop.f32.mrb[0].mxu0
        %v542 = vadd.f32 %v364, %v541
        %543 = vdwg.mxu0
        %v544 = vmax.f32 %v508, 0.0
        %v545 = vmax.f32 %v512, 0.0
        %v546 = vmax.f32 %v518, 0.0
        %v547 = vmax.f32 %v522, 0.0
        %v548 = vmax.f32 %v528, 0.0
        %v549 = vmax.f32 %v532, 0.0
        %v550 = vmax.f32 %v538, 0.0
        %v551 = vmax.f32 %v542, 0.0
        %v552 = vpack.c.bf16 %v545, %v544
        %v553 = vpack.c.bf16 %v547, %v546
        %v554 = vpack.c.bf16 %v549, %v548
        %v555 = vpack.c.bf16 %v551, %v550
        %v556 = vld [vmem:[#allocation7] sm:$0xf]
        %v557 = vld [vmem:[#allocation7 + $0x4] sm:$0xf]
        %v558 = vld [vmem:[#allocation7 + $0x8] sm:$0xf]
        %v559 = vld [vmem:[#allocation7 + $0xc] sm:$0xf]
        %v560 = vld [vmem:[#allocation7 + $0x10] sm:$0xf]
        %v561 = vld [vmem:[#allocation7 + $0x14] sm:$0xf]
        %v562 = vld [vmem:[#allocation7 + $0x18] sm:$0xf]
        %v563 = vld [vmem:[#allocation7 + $0x1c] sm:$0xf]
        %v564 = vld [vmem:[#allocation7 + $0x20] sm:$0xf]
        %v565 = vld [vmem:[#allocation7 + $0x24] sm:$0xf]
        %v566 = vld [vmem:[#allocation7 + $0x28] sm:$0xf]
        %v567 = vld [vmem:[#allocation7 + $0x2c] sm:$0xf]
        %v568 = vld [vmem:[#allocation7 + $0x30] sm:$0xf]
        %v569 = vld [vmem:[#allocation7 + $0x34] sm:$0xf]
        %v570 = vld [vmem:[#allocation7 + $0x38] sm:$0xf]
        %v571 = vld [vmem:[#allocation7 + $0x3c] sm:$0xf]
        %v572 = vld [vmem:[%s5 + $0x2] sm:$0x1]
        %v574 = vlaneseq
        %v575 = vshrl.u32 %v574, 7
        %v576 = vsub.s32 0, %v575
        %v577 = vrot.slane %v572, %v576
        %v595 = vunpack.c.l.b16 %v556
        %v596 = vunpack.c.l.b16 %v557
        %v597 = vunpack.c.l.b16 %v558
        %v598 = vunpack.c.l.b16 %v559
        %v599 = vunpack.c.l.b16 %v560
        %v600 = vunpack.c.l.b16 %v561
        %v601 = vunpack.c.l.b16 %v562
        %v602 = vunpack.c.l.b16 %v563
        %v603 = vunpack.c.l.b16 %v564
        %v604 = vunpack.c.l.b16 %v565
        %v605 = vunpack.c.l.b16 %v566
        %v606 = vunpack.c.l.b16 %v567
        %v607 = vunpack.c.l.b16 %v568
        %v608 = vunpack.c.l.b16 %v569
        %v609 = vunpack.c.l.b16 %v570
        %v610 = vunpack.c.l.b16 %v571
        %v611 = vpack.c.b16 %v596, %v595
        %v612 = vpack.c.b16 %v598, %v597
        %v613 = vpack.c.b16 %v600, %v599
        %v614 = vpack.c.b16 %v602, %v601
        %v615 = vpack.c.b16 %v604, %v603
        %v616 = vpack.c.b16 %v606, %v605
        %v617 = vpack.c.b16 %v608, %v607
        %v618 = vpack.c.b16 %v610, %v609
        %627 = vmatprep.subr.bf16.mxu0 0
        %628 = vmatpush1.bf16.msra.mxu0 %v611
        %629 = vmatprep.subr.bf16.mxu0 0
        %630 = vmatpush1.bf16.msra.mxu0 %v612
        %631 = vmatprep.subr.bf16.mxu0 0
        %632 = vmatpush1.bf16.msra.mxu0 %v613
        %633 = vmatprep.subr.bf16.mxu0 0
        %634 = vmatpush1.bf16.msra.mxu0 %v614
        %635 = vmatprep.subr.bf16.mxu0 0
        %636 = vmatpush1.bf16.msra.mxu0 %v615
        %637 = vmatprep.subr.bf16.mxu0 0
        %638 = vmatpush1.bf16.msra.mxu0 %v616
        %639 = vmatprep.subr.bf16.mxu0 0
        %640 = vmatpush1.bf16.msra.mxu0 %v617
        %641 = vmatprep.subr.bf16.mxu0 0
        %642 = vmatpush1.bf16.msra.mxu0 %v618
        %643 = vmatprep.subr.bf16.mxu0 0
        %644 = vmatpush1.bf16.msra.mxu0 0
        %645 = vmatprep.subr.bf16.mxu0 0
        %646 = vmatpush1.bf16.msra.mxu0 0
        %647 = vmatprep.subr.bf16.mxu0 0
        %648 = vmatpush1.bf16.msra.mxu0 0
        %649 = vmatprep.subr.bf16.mxu0 0
        %650 = vmatpush1.bf16.msra.mxu0 0
        %651 = vmatprep.subr.bf16.mxu0 0
        %652 = vmatpush1.bf16.msra.mxu0 0
        %653 = vmatprep.subr.bf16.mxu0 0
        %654 = vmatpush1.bf16.msra.mxu0 0
        %655 = vmatprep.subr.bf16.mxu0 0
        %656 = vmatpush1.bf16.msra.mxu0 0
        %657 = vmatprep.subr.bf16.mxu0 0
        %658 = vmatpush1.bf16.msra.mxu0 0
        %659 = vmatprep.mubr.bf16.mxu0 0
        %660 = vmatmul.mubr.bf16.gmra.mrb[0].mxu0 %v552
        %v661 = vpop.f32.mrb[0].mxu0
        %v662 = vadd.f32 %v577, %v661
        %v663 = vpop.f32.mrb[0].mxu0
        %v664 = vpop.f32.mrb[0].mxu0
        %v665 = vadd.f32 %v577, %v664
        %v666 = vpop.f32.mrb[0].mxu0
        %667 = vmatprep.mubr.bf16.mxu0 0
        %668 = vmatmul.mubr.bf16.gmra.mrb[0].mxu0 %v553
        %v669 = vpop.f32.mrb[0].mxu0
        %v670 = vadd.f32 %v577, %v669
        %v671 = vpop.f32.mrb[0].mxu0
        %v672 = vpop.f32.mrb[0].mxu0
        %v673 = vadd.f32 %v577, %v672
        %v674 = vpop.f32.mrb[0].mxu0
        %675 = vmatprep.mubr.bf16.mxu0 0
        %676 = vmatmul.mubr.bf16.gmra.mrb[0].mxu0 %v554
        %v677 = vpop.f32.mrb[0].mxu0
        %v678 = vadd.f32 %v577, %v677
        %v679 = vpop.f32.mrb[0].mxu0
        %v680 = vpop.f32.mrb[0].mxu0
        %v681 = vadd.f32 %v577, %v680
        %v682 = vpop.f32.mrb[0].mxu0
        %683 = vmatprep.mubr.bf16.mxu0 0
        %684 = vmatmul.mubr.bf16.gmra.mrb[0].mxu0 %v555
        %v685 = vpop.f32.mrb[0].mxu0
        %v686 = vadd.f32 %v577, %v685
        %v687 = vpop.f32.mrb[0].mxu0
        %v688 = vpop.f32.mrb[0].mxu0
        %v689 = vadd.f32 %v577, %v688
        %v690 = vpop.f32.mrb[0].mxu0
        %691 = vdwg.mxu0
        %v692 = vmax.f32 %v662, 0.0
        %v693 = vmax.f32 %v665, 0.0
        %v694 = vmax.f32 %v670, 0.0
        %v695 = vmax.f32 %v673, 0.0
        %v696 = vmax.f32 %v678, 0.0
        %v697 = vmax.f32 %v681, 0.0
        %v698 = vmax.f32 %v686, 0.0
        %v699 = vmax.f32 %v689, 0.0
        %v700 = vpack.c.bf16 %v693, %v692
        %v701 = vpack.c.bf16 %v695, %v694
        %v702 = vpack.c.bf16 %v697, %v696
        %v703 = vpack.c.bf16 %v699, %v698
        %v704 = vld [vmem:[#allocation8] sm:$0xf]
        %v705 = vld [vmem:[#allocation8 + $0x4] sm:$0xf]
        %v706 = vld [vmem:[#allocation8 + $0x8] sm:$0xf]
        %v707 = vld [vmem:[#allocation8 + $0xc] sm:$0xf]
        %v708 = vld [vmem:[#allocation8 + $0x10] sm:$0xf]
        %v709 = vld [vmem:[#allocation8 + $0x14] sm:$0xf]
        %v710 = vld [vmem:[#allocation8 + $0x18] sm:$0xf]
        %v711 = vld [vmem:[#allocation8 + $0x1c] sm:$0xf]
        %v712 = vld [vmem:[#allocation8 + $0x20] sm:$0xf]
        %v713 = vld [vmem:[#allocation8 + $0x24] sm:$0xf]
        %v714 = vld [vmem:[#allocation8 + $0x28] sm:$0xf]
        %v715 = vld [vmem:[#allocation8 + $0x2c] sm:$0xf]
        %v716 = vld [vmem:[#allocation8 + $0x30] sm:$0xf]
        %v717 = vld [vmem:[#allocation8 + $0x34] sm:$0xf]
        %v718 = vld [vmem:[#allocation8 + $0x38] sm:$0xf]
        %v719 = vld [vmem:[#allocation8 + $0x3c] sm:$0xf]
        %v720 = vld [vmem:[%s5 + $0x3] sm:$0x1]
        %v722 = vlaneseq
        %v723 = vshrl.u32 %v722, 7
        %v724 = vsub.s32 0, %v723
        %v725 = vrot.slane %v720, %v724
        %v743 = vunpack.c.l.b16 %v704
        %v744 = vunpack.c.l.b16 %v705
        %v745 = vunpack.c.l.b16 %v706
        %v746 = vunpack.c.l.b16 %v707
        %v747 = vunpack.c.l.b16 %v708
        %v748 = vunpack.c.l.b16 %v709
        %v749 = vunpack.c.l.b16 %v710
        %v750 = vunpack.c.l.b16 %v711
        %v751 = vunpack.c.l.b16 %v712
        %v752 = vunpack.c.l.b16 %v713
        %v753 = vunpack.c.l.b16 %v714
        %v754 = vunpack.c.l.b16 %v715
        %v755 = vunpack.c.l.b16 %v716
        %v756 = vunpack.c.l.b16 %v717
        %v757 = vunpack.c.l.b16 %v718
        %v758 = vunpack.c.l.b16 %v719
        %v759 = vpack.c.b16 %v744, %v743
        %v760 = vpack.c.b16 %v746, %v745
        %v761 = vpack.c.b16 %v748, %v747
        %v762 = vpack.c.b16 %v750, %v749
        %v763 = vpack.c.b16 %v752, %v751
        %v764 = vpack.c.b16 %v754, %v753
        %v765 = vpack.c.b16 %v756, %v755
        %v766 = vpack.c.b16 %v758, %v757
        %775 = vmatprep.subr.bf16.mxu0 0
        %776 = vmatpush1.bf16.msra.mxu0 %v759
        %777 = vmatprep.subr.bf16.mxu0 0
        %778 = vmatpush1.bf16.msra.mxu0 %v760
        %779 = vmatprep.subr.bf16.mxu0 0
        %780 = vmatpush1.bf16.msra.mxu0 %v761
        %781 = vmatprep.subr.bf16.mxu0 0
        %782 = vmatpush1.bf16.msra.mxu0 %v762
        %783 = vmatprep.subr.bf16.mxu0 0
        %784 = vmatpush1.bf16.msra.mxu0 %v763
        %785 = vmatprep.subr.bf16.mxu0 0
        %786 = vmatpush1.bf16.msra.mxu0 %v764
        %787 = vmatprep.subr.bf16.mxu0 0
        %788 = vmatpush1.bf16.msra.mxu0 %v765
        %789 = vmatprep.subr.bf16.mxu0 0
        %790 = vmatpush1.bf16.msra.mxu0 %v766
        %791 = vmatprep.subr.bf16.mxu0 0
        %792 = vmatpush1.bf16.msra.mxu0 0
        %793 = vmatprep.subr.bf16.mxu0 0
        %794 = vmatpush1.bf16.msra.mxu0 0
        %795 = vmatprep.subr.bf16.mxu0 0
        %796 = vmatpush1.bf16.msra.mxu0 0
        %797 = vmatprep.subr.bf16.mxu0 0
        %798 = vmatpush1.bf16.msra.mxu0 0
        %799 = vmatprep.subr.bf16.mxu0 0
        %800 = vmatpush1.bf16.msra.mxu0 0
        %801 = vmatprep.subr.bf16.mxu0 0
        %802 = vmatpush1.bf16.msra.mxu0 0
        %803 = vmatprep.subr.bf16.mxu0 0
        %804 = vmatpush1.bf16.msra.mxu0 0
        %805 = vmatprep.subr.bf16.mxu0 0
        %806 = vmatpush1.bf16.msra.mxu0 0
        %807 = vmatprep.mubr.bf16.mxu0 0
        %808 = vmatmul.mubr.bf16.gmra.mrb[0].mxu0 %v700
        %v809 = vpop.f32.mrb[0].mxu0
        %v810 = vadd.f32 %v725, %v809
        %v811 = vpop.f32.mrb[0].mxu0
        %v812 = vpop.f32.mrb[0].mxu0
        %v813 = vadd.f32 %v725, %v812
        %v814 = vpop.f32.mrb[0].mxu0
        %815 = vmatprep.mubr.bf16.mxu0 0
        %816 = vmatmul.mubr.bf16.gmra.mrb[0].mxu0 %v701
        %v817 = vpop.f32.mrb[0].mxu0
        %v818 = vadd.f32 %v725, %v817
        %v819 = vpop.f32.mrb[0].mxu0
        %v820 = vpop.f32.mrb[0].mxu0
        %v821 = vadd.f32 %v725, %v820
        %v822 = vpop.f32.mrb[0].mxu0
        %823 = vmatprep.mubr.bf16.mxu0 0
        %824 = vmatmul.mubr.bf16.gmra.mrb[0].mxu0 %v702
        %v825 = vpop.f32.mrb[0].mxu0
        %v826 = vadd.f32 %v725, %v825
        %v827 = vpop.f32.mrb[0].mxu0
        %v828 = vpop.f32.mrb[0].mxu0
        %v829 = vadd.f32 %v725, %v828
        %v830 = vpop.f32.mrb[0].mxu0
        %831 = vmatprep.mubr.bf16.mxu0 0
        %832 = vmatmul.mubr.bf16.gmra.mrb[0].mxu0 %v703
        %v833 = vpop.f32.mrb[0].mxu0
        %v834 = vadd.f32 %v725, %v833
        %v835 = vpop.f32.mrb[0].mxu0
        %v836 = vpop.f32.mrb[0].mxu0
        %v837 = vadd.f32 %v725, %v836
        %v838 = vpop.f32.mrb[0].mxu0
        %839 = vdwg.mxu0
        %v840 = vmax.f32 %v810, 0.0
        %v841 = vmax.f32 %v813, 0.0
        %v842 = vmax.f32 %v818, 0.0
        %v843 = vmax.f32 %v821, 0.0
        %v844 = vmax.f32 %v826, 0.0
        %v845 = vmax.f32 %v829, 0.0
        %v846 = vmax.f32 %v834, 0.0
        %v847 = vmax.f32 %v837, 0.0
        %v848 = vpack.c.bf16 %v841, %v840
        %v849 = vpack.c.bf16 %v843, %v842
        %v850 = vpack.c.bf16 %v845, %v844
        %v851 = vpack.c.bf16 %v847, %v846
        %v852 = vld [vmem:[#allocation10] sm:$0xf]
        %v853 = vld [vmem:[#allocation10 + $0x4] sm:$0xf]
        %v854 = vld [vmem:[#allocation10 + $0x8] sm:$0xf]
        %v855 = vld [vmem:[#allocation10 + $0xc] sm:$0xf]
        %v856 = vld [vmem:[#allocation10 + $0x10] sm:$0xf]
        %v857 = vld [vmem:[#allocation10 + $0x14] sm:$0xf]
        %v858 = vld [vmem:[#allocation10 + $0x18] sm:$0xf]
        %v859 = vld [vmem:[#allocation10 + $0x1c] sm:$0xf]
        %v860 = vld [vmem:[#allocation10 + $0x20] sm:$0xf]
        %v861 = vld [vmem:[#allocation10 + $0x24] sm:$0xf]
        %v862 = vld [vmem:[#allocation10 + $0x28] sm:$0xf]
        %v863 = vld [vmem:[#allocation10 + $0x2c] sm:$0xf]
        %v864 = vld [vmem:[#allocation10 + $0x30] sm:$0xf]
        %v865 = vld [vmem:[#allocation10 + $0x34] sm:$0xf]
        %v866 = vld [vmem:[#allocation10 + $0x38] sm:$0xf]
        %v867 = vld [vmem:[#allocation10 + $0x3c] sm:$0xf]
        %v868 = vld [vmem:[%s5 + $0x4] sm:$0x1]
        %v870 = vlaneseq
        %v871 = vshrl.u32 %v870, 7
        %v872 = vsub.s32 0, %v871
        %v873 = vrot.slane %v868, %v872
        %v891 = vunpack.c.l.b16 %v852
        %v892 = vunpack.c.l.b16 %v853
        %v893 = vunpack.c.l.b16 %v854
        %v894 = vunpack.c.l.b16 %v855
        %v895 = vunpack.c.l.b16 %v856
        %v896 = vunpack.c.l.b16 %v857
        %v897 = vunpack.c.l.b16 %v858
        %v898 = vunpack.c.l.b16 %v859
        %v899 = vunpack.c.l.b16 %v860
        %v900 = vunpack.c.l.b16 %v861
        %v901 = vunpack.c.l.b16 %v862
        %v902 = vunpack.c.l.b16 %v863
        %v903 = vunpack.c.l.b16 %v864
        %v904 = vunpack.c.l.b16 %v865
        %v905 = vunpack.c.l.b16 %v866
        %v906 = vunpack.c.l.b16 %v867
        %v907 = vpack.c.b16 %v892, %v891
        %v908 = vpack.c.b16 %v894, %v893
        %v909 = vpack.c.b16 %v896, %v895
        %v910 = vpack.c.b16 %v898, %v897
        %v911 = vpack.c.b16 %v900, %v899
        %v912 = vpack.c.b16 %v902, %v901
        %v913 = vpack.c.b16 %v904, %v903
        %v914 = vpack.c.b16 %v906, %v905
        %923 = vmatprep.subr.bf16.mxu0 0
        %924 = vmatpush1.bf16.msra.mxu0 %v907
        %925 = vmatprep.subr.bf16.mxu0 0
        %926 = vmatpush1.bf16.msra.mxu0 %v908
        %927 = vmatprep.subr.bf16.mxu0 0
        %928 = vmatpush1.bf16.msra.mxu0 %v909
        %929 = vmatprep.subr.bf16.mxu0 0
        %930 = vmatpush1.bf16.msra.mxu0 %v910
        %931 = vmatprep.subr.bf16.mxu0 0
        %932 = vmatpush1.bf16.msra.mxu0 %v911
        %933 = vmatprep.subr.bf16.mxu0 0
        %934 = vmatpush1.bf16.msra.mxu0 %v912
        %935 = vmatprep.subr.bf16.mxu0 0
        %936 = vmatpush1.bf16.msra.mxu0 %v913
        %937 = vmatprep.subr.bf16.mxu0 0
        %938 = vmatpush1.bf16.msra.mxu0 %v914
        %939 = vmatprep.subr.bf16.mxu0 0
        %940 = vmatpush1.bf16.msra.mxu0 0
        %941 = vmatprep.subr.bf16.mxu0 0
        %942 = vmatpush1.bf16.msra.mxu0 0
        %943 = vmatprep.subr.bf16.mxu0 0
        %944 = vmatpush1.bf16.msra.mxu0 0
        %945 = vmatprep.subr.bf16.mxu0 0
        %946 = vmatpush1.bf16.msra.mxu0 0
        %947 = vmatprep.subr.bf16.mxu0 0
        %948 = vmatpush1.bf16.msra.mxu0 0
        %949 = vmatprep.subr.bf16.mxu0 0
        %950 = vmatpush1.bf16.msra.mxu0 0
        %951 = vmatprep.subr.bf16.mxu0 0
        %952 = vmatpush1.bf16.msra.mxu0 0
        %953 = vmatprep.subr.bf16.mxu0 0
        %954 = vmatpush1.bf16.msra.mxu0 0
        %955 = vmatprep.mubr.bf16.mxu0 0
        %956 = vmatmul.mubr.bf16.gmra.mrb[0].mxu0 %v848
        %v957 = vpop.f32.mrb[0].mxu0
        %v958 = vadd.f32 %v873, %v957
        %v959 = vpop.f32.mrb[0].mxu0
        %v960 = vpop.f32.mrb[0].mxu0
        %v961 = vadd.f32 %v873, %v960
        %v962 = vpop.f32.mrb[0].mxu0
        %963 = vmatprep.mubr.bf16.mxu0 0
        %964 = vmatmul.mubr.bf16.gmra.mrb[0].mxu0 %v849
        %v965 = vpop.f32.mrb[0].mxu0
        %v966 = vadd.f32 %v873, %v965
        %v967 = vpop.f32.mrb[0].mxu0
        %v968 = vpop.f32.mrb[0].mxu0
        %v969 = vadd.f32 %v873, %v968
        %v970 = vpop.f32.mrb[0].mxu0
        %971 = vmatprep.mubr.bf16.mxu0 0
        %972 = vmatmul.mubr.bf16.gmra.mrb[0].mxu0 %v850
        %v973 = vpop.f32.mrb[0].mxu0
        %v974 = vadd.f32 %v873, %v973
        %v975 = vpop.f32.mrb[0].mxu0
        %v976 = vpop.f32.mrb[0].mxu0
        %v977 = vadd.f32 %v873, %v976
        %v978 = vpop.f32.mrb[0].mxu0
        %979 = vmatprep.mubr.bf16.mxu0 0
        %980 = vmatmul.mubr.bf16.gmra.mrb[0].mxu0 %v851
        %v981 = vpop.f32.mrb[0].mxu0
        %v982 = vadd.f32 %v873, %v981
        %v983 = vpop.f32.mrb[0].mxu0
        %v984 = vpop.f32.mrb[0].mxu0
        %v985 = vadd.f32 %v873, %v984
        %v986 = vpop.f32.mrb[0].mxu0
        %987 = vdwg.mxu0
        %v988 = vadd.f32 %v506, %v958
        %v989 = vadd.f32 %v510, %v961
        %v990 = vadd.f32 %v516, %v966
        %v991 = vadd.f32 %v520, %v969
        %v992 = vadd.f32 %v526, %v974
        %v993 = vadd.f32 %v530, %v977
        %v994 = vadd.f32 %v536, %v982
        %v995 = vadd.f32 %v540, %v985
        %996 = vst [vmem:[%s327] sm:$0xff] %v988
        %997 = vst [vmem:[%s327 + $0x8] sm:$0xff] %v989
        %998 = vst [vmem:[%s327 + $0x10] sm:$0xff] %v990
        %999 = vst [vmem:[%s327 + $0x18] sm:$0xff] %v991
        %1000 = vst [vmem:[%s327 + $0x20] sm:$0xff] %v992
        %1001 = vst [vmem:[%s327 + $0x28] sm:$0xff] %v993
        %1002 = vst [vmem:[%s327 + $0x30] sm:$0xff] %v994
        %1003 = vst [vmem:[%s327 + $0x38] sm:$0xff] %v995
        %s1004 = sand.u32 %s164, 1
        %s1005 = scalar_lea.sflag [#allocation4], %s1004
        %s1006 = sand.u32 %s164, 1
        %s1007 = smul.addr %s1006, 64
        %s1008 = scalar_lea.vmem [#allocation11], %s1007
        // Predicated region
        $region65: #{tpu_custom_call.1} parent=43 // pred_check
          %p1009 = pneg %p174
        $region66: #{tpu_custom_call.1} parent=43 // pred_check_branch
          %1011 = sbr.rel (%p1009) target = $region68
        $region67: #{tpu_custom_call.1} parent=43 // pred_region
          %s1012 = smul.u32 8, %s25
          %s1014 = ssub.s32 1024, 1024
          %1015 = vsyncadd %s1005, %s1014
          %s1016 = smul.addr %s1012, 128
          %s1017 = scalar_lea.hbm %s6, %s1016
          %s1018 = sshll.u32 %s1008, 4
          %s1019 = int_to_ptr.vmem [resolvable:$true] %s1018
          %1024 = dma.vmem_to_hbm [thread:$0]  %s1019, 1024, %s1017, %s1005, 128, 128, 8
        $region68: #{tpu_custom_call.1} parent=43 // pred_fallthru
          _
      $region44: #{tpu_custom_call.1} parent=5 // pred_fallthru
        _
      %p1025 = scmp.le.s32.totalorder 2, %s20
      // Predicated region
      $region69: #{tpu_custom_call.1} parent=5 // pred_check
        %p1026 = pneg %p1025
      $region70: #{tpu_custom_call.1} parent=5 // pred_check_branch
        %1028 = sbr.rel (%p1026) target = $region72
      $region71: #{tpu_custom_call.1} parent=5 // pred_region
        %s1029 = ssub.s32 %s20, 2
        // Predicated region
        $region73: #{tpu_custom_call.1} parent=71 // pred_check
          %p1030 = pneg %p180
        $region74: #{tpu_custom_call.1} parent=71 // pred_check_branch
          %1032 = sbr.rel (%p1030) target = $region76
        $region75: #{tpu_custom_call.1} parent=71 // pred_region
          %s1033 = sand.u32 %s165, 1
          %s1034 = scalar_lea.sflag [#allocation4], %s1033
          %s1035 = sand.u32 %s165, 1
          %s1036 = smul.addr %s1035, 64
          %s1037 = scalar_lea.vmem [#allocation11], %s1036
          %1038 = dma.done %s1034, 1024
        $region76: #{tpu_custom_call.1} parent=71 // pred_fallthru
          _
      $region72: #{tpu_custom_call.1} parent=5 // pred_fallthru
        _
    $region6: #{tpu_custom_call.1} parent=1 // loop_footer
      %s24 = sadd.s32 1, %s20
    $region7: #{tpu_custom_call.1} parent=1 // loop_footer_branch
      %19 = sbr.rel target = $region3
    $region8: #{tpu_custom_call.1} parent=1 // loop_exit
      _
    %1039 = vsyncpa [#allocation3], 1
    %s1040 = scalar_lea.sflag [#allocation3], 1
    %1041 = vsyncpa %s1040, 1
    %1042 = vsyncpa [#allocation6], 1
    %1043 = vsyncpa [#allocation9], 1
    %1044 = vsyncpa [#allocation4], 1
    %s1045 = scalar_lea.sflag [#allocation4], 1
    %1046 = vsyncpa %s1045, 1

</llo_original>
